<compile_context>
chip_gen: v7x
topology: tpu7x:2x2x1
jax: 0.10.0
libtpu: 0.0.40
codegen_flags: <defaults>
</compile_context>

<pallas_src>
import functools

import jax
import jax.numpy as jnp
from jax.experimental import pallas as pl
from jax.experimental.pallas import tpu as pltpu


def _round_up(a, m):
    return (a + m - 1) // m * m


def _projection_kernel(mt_ref, depth_ref, outx_ref, outy_ref, *,
                       height, width, tile_h, w_pad):
    """One (batch, row-tile) per grid step.

    mt_ref   : SMEM (B, 12)  fused [M | t] rows: [M00,M01,M02,t0, M10,..,t1, M20,..,t2]
    depth_ref: VMEM (1, tile_h, w_pad)
    outx_ref : VMEM (1, tile_h, w_pad)   normalized x coordinates
    outy_ref : VMEM (1, tile_h, w_pad)   normalized y coordinates
    """
    b = pl.program_id(0)
    j = pl.program_id(1)

    d = depth_ref[0]                                        # (tile_h, w_pad)

    # Pixel coordinates of this tile (no DMA'd homogeneous-point tensor).
    row = jax.lax.broadcasted_iota(jnp.int32, (tile_h, w_pad), 0)
    col = jax.lax.broadcasted_iota(jnp.int32, (tile_h, w_pad), 1)
    y = (j * tile_h + row).astype(jnp.float32)
    x = col.astype(jnp.float32)

    m00 = mt_ref[b, 0]
    m01 = mt_ref[b, 1]
    m02 = mt_ref[b, 2]
    t0 = mt_ref[b, 3]
    m10 = mt_ref[b, 4]
    m11 = mt_ref[b, 5]
    m12 = mt_ref[b, 6]
    t1 = mt_ref[b, 7]
    m20 = mt_ref[b, 8]
    m21 = mt_ref[b, 9]
    m22 = mt_ref[b, 10]
    t2 = mt_ref[b, 11]

    # Fused backproject + reproject: p2 = d * (M @ [x, y, 1]) + t
    p2x = d * (m00 * x + m01 * y + m02) + t0
    p2y = d * (m10 * x + m11 * y + m12) + t1
    p2z = d * (m20 * x + m21 * y + m22) + t2

    z = p2z + 1e-7
    inv_z = pl.reciprocal(z, approx=True)        # EUP (free slot)
    inv_z = inv_z * (2.0 - z * inv_z)            # one Newton step -> ~f32 accuracy

    # Fold ((v / (dim - 1)) - 0.5) * 2  ==  v * (2 / (dim - 1)) - 1
    outx_ref[0] = p2x * inv_z * (2.0 / (width - 1)) - 1.0
    outy_ref[0] = p2y * inv_z * (2.0 / (height - 1)) - 1.0


class Projection:
    """JAX / Pallas port of the PyTorch Projection module (forward pass only)."""

    # Target ~64K f32 elements (256 KiB) per tile buffer: amortizes per-step
    # overhead while staying far under the scoped-VMEM limits of v5e/v6e/v7x.
    _TARGET_TILE_ELEMS = 512 * 128

    def __init__(self, batch_size, height, width):
        self.batch_size = batch_size
        self.height = height
        self.width = width

        # Lane-dense width (multiple of 128), sublane-dense row tile (multiple of 8).
        self.w_pad = _round_up(width, 128)
        h8 = _round_up(height, 8)
        th = max(8, (self._TARGET_TILE_ELEMS // self.w_pad) // 8 * 8)
        if th >= h8:
            self.tile_h = h8
            self.h_pad = h8
        else:
            self.tile_h = th
            self.h_pad = _round_up(h8, th)
        self.grid_h = self.h_pad // self.tile_h

    def __call__(self, depth, T, bp_invK, rp_K):
        B, H, W = self.batch_size, self.height, self.width

        depth_img = depth.reshape(B, H, W).astype(jnp.float32)
        pad_h = self.h_pad - H
        pad_w = self.w_pad - W
        if pad_h or pad_w:
            depth_img = jnp.pad(depth_img, ((0, 0), (0, pad_h), (0, pad_w)),
                                constant_values=1.0)

        # Tiny batched 3x3 / 3x4 products stay in plain JAX (glue).
        P = (rp_K.astype(jnp.float32) @ T.astype(jnp.float32))[:, :3, :]   # (B,3,4)
        M = P[:, :, :3] @ bp_invK[:, :3, :3].astype(jnp.float32)           # (B,3,3)
        mt = jnp.concatenate([M, P[:, :, 3:]], axis=2).reshape(B, 12)      # (B,12)
        mt = mt.astype(jnp.float32)

        kernel = functools.partial(_projection_kernel, height=H, width=W,
                                   tile_h=self.tile_h, w_pad=self.w_pad)

        blk = (1, self.tile_h, self.w_pad)
        idx = lambda b, j, mt_ref: (b, j, 0)

        xs, ys = pl.pallas_call(
            kernel,
            out_shape=(
                jax.ShapeDtypeStruct((B, self.h_pad, self.w_pad), jnp.float32),
                jax.ShapeDtypeStruct((B, self.h_pad, self.w_pad), jnp.float32),
            ),
            grid_spec=pltpu.PrefetchScalarGridSpec(
                num_scalar_prefetch=1,
                grid=(B, self.grid_h),
                in_specs=[pl.BlockSpec(blk, idx)],
                out_specs=(pl.BlockSpec(blk, idx), pl.BlockSpec(blk, idx)),
            ),
            compiler_params=pltpu.CompilerParams(
                dimension_semantics=("parallel", "parallel")),
        )(mt, depth_img)

        xs = xs[:, :H, :W]
        ys = ys[:, :H, :W]
        # (B, H, W, 2) to match torch's permute(0, 2, 3, 1) output layout.
        return jnp.stack([xs, ys], axis=-1)


def _reference_forward(depth, T, bp_invK, rp_K, B, H, W):
    """Pure-JAX replica of the PyTorch forward (unfused) for validation."""
    N = H * W
    xg, yg = jnp.meshgrid(jnp.arange(W, dtype=jnp.float32),
                          jnp.arange(H, dtype=jnp.float32), indexing="xy")
    homo = jnp.stack([xg.reshape(-1), yg.reshape(-1),
                      jnp.ones((N,), jnp.float32)], axis=0)                 # (3, N)
    d = depth.reshape(B, 1, N).astype(jnp.float32)
    p3 = jnp.matmul(bp_invK[:, :3, :3], jnp.broadcast_to(homo, (B, 3, N))) * d
    cam = jnp.concatenate([p3, jnp.ones((B, 1, N), jnp.float32)], axis=1)
    P = (rp_K @ T)[:, :3, :]
    p2 = P @ cam
    norm = p2[:, :2, :] / (p2[:, 2:, :] + 1e-7)
    norm = norm.reshape(B, 2, H, W).transpose(0, 2, 3, 1)
    norm = norm.at[..., 0].divide(W - 1)
    norm = norm.at[..., 1].divide(H - 1)
    return (norm - 0.5) * 2.0


if __name__ == "__main__":
    B, H, W = 2, 16, 16
    key = jax.random.PRNGKey(0)
    k_depth, k_T = jax.random.split(key)

    # Depth map (NCHW like the torch module expects), positive values.
    depth = jax.random.uniform(k_depth, (B, 1, H, W), jnp.float32,
                               minval=1.0, maxval=5.0)

    # Deterministic camera intrinsics K (4x4) and its inverse.
    fx = fy = W / 2.0
    cx, cy = (W - 1) / 2.0, (H - 1) / 2.0
    K3 = jnp.array([[fx, 0.0, cx],
                    [0.0, fy, cy],
                    [0.0, 0.0, 1.0]], jnp.float32)
    K = jnp.eye(4, dtype=jnp.float32).at[:3, :3].set(K3)
    invK = jnp.eye(4, dtype=jnp.float32).at[:3, :3].set(jnp.linalg.inv(K3))
    rp_K = jnp.broadcast_to(K, (B, 4, 4))
    bp_invK = jnp.broadcast_to(invK, (B, 4, 4))

    # Relative pose: identity plus a small deterministic perturbation.
    T = (jnp.broadcast_to(jnp.eye(4, dtype=jnp.float32), (B, 4, 4))
         + 0.02 * jax.random.normal(k_T, (B, 4, 4), jnp.float32))

    proj = Projection(B, H, W)
    out = jax.block_until_ready(proj(depth, T, bp_invK, rp_K))

    ref = _reference_forward(depth, T, bp_invK, rp_K, B, H, W)
    assert out.shape == (B, H, W, 2), out.shape
    # approx reciprocal + 1 Newton step => ~1e-5 relative error on O(1) outputs.
    assert jnp.allclose(out, ref, atol=1e-3, rtol=1e-3), "mismatch vs reference"

    print("KERNEL_OK")
</pallas_src>

<mosaic_0001>
module attributes {stable_mosaic.version = 11 : i64} {
  func.func @_projection_kernel(%arg0: i32, %arg1: i32, %arg2: memref<2x12xf32, #tpu.memory_space<smem>>, %arg3: memref<1x16x128xf32, #tpu.memory_space<vmem>>, %arg4: memref<1x16x128xf32, #tpu.memory_space<vmem>>, %arg5: memref<1x16x128xf32, #tpu.memory_space<vmem>>) attributes {dimension_semantics = [#tpu.dimension_semantics<parallel>, #tpu.dimension_semantics<parallel>], iteration_bounds = array<i64: 2, 1>, scalar_prefetch = 1 : i64, scratch_operands = 0 : i64, tpu.core_type = #tpu.core_type<tc>, window_params = [{transform_indices = @transform_0, window_bounds = array<i64: 1, 16, 128>}, {transform_indices = @transform_1, window_bounds = array<i64: 1, 16, 128>}, {transform_indices = @transform_2, window_bounds = array<i64: 1, 16, 128>}]} {
    %c0 = arith.constant 0 : index
    %c0_0 = arith.constant 0 : index
    %c0_1 = arith.constant 0 : index
    %0 = vector.load %arg3[%c0, %c0_0, %c0_1] : memref<1x16x128xf32, #tpu.memory_space<vmem>>, vector<1x16x128xf32>
    %1 = vector.shape_cast %0 : vector<1x16x128xf32> to vector<16x128xf32>
    %2 = tpu.iota {dimensions = array<i32: 0>} : vector<16x128xi32>
    %3 = tpu.iota {dimensions = array<i32: 1>} : vector<16x128xi32>
    %c16_i32 = arith.constant 16 : i32
    %4 = arith.muli %arg1, %c16_i32 : i32
    %5 = vector.broadcast %4 : i32 to vector<16x128xi32>
    %6 = arith.addi %5, %2 : vector<16x128xi32>
    %7 = arith.sitofp %6 : vector<16x128xi32> to vector<16x128xf32>
    %8 = arith.sitofp %3 : vector<16x128xi32> to vector<16x128xf32>
    %9 = arith.index_cast %arg0 : i32 to index
    %c0_2 = arith.constant 0 : index
    %10 = memref.load %arg2[%9, %c0_2] : memref<2x12xf32, #tpu.memory_space<smem>>
    %11 = arith.index_cast %arg0 : i32 to index
    %c1 = arith.constant 1 : index
    %12 = memref.load %arg2[%11, %c1] : memref<2x12xf32, #tpu.memory_space<smem>>
    %13 = arith.index_cast %arg0 : i32 to index
    %c2 = arith.constant 2 : index
    %14 = memref.load %arg2[%13, %c2] : memref<2x12xf32, #tpu.memory_space<smem>>
    %15 = arith.index_cast %arg0 : i32 to index
    %c3 = arith.constant 3 : index
    %16 = memref.load %arg2[%15, %c3] : memref<2x12xf32, #tpu.memory_space<smem>>
    %17 = arith.index_cast %arg0 : i32 to index
    %c4 = arith.constant 4 : index
    %18 = memref.load %arg2[%17, %c4] : memref<2x12xf32, #tpu.memory_space<smem>>
    %19 = arith.index_cast %arg0 : i32 to index
    %c5 = arith.constant 5 : index
    %20 = memref.load %arg2[%19, %c5] : memref<2x12xf32, #tpu.memory_space<smem>>
    %21 = arith.index_cast %arg0 : i32 to index
    %c6 = arith.constant 6 : index
    %22 = memref.load %arg2[%21, %c6] : memref<2x12xf32, #tpu.memory_space<smem>>
    %23 = arith.index_cast %arg0 : i32 to index
    %c7 = arith.constant 7 : index
    %24 = memref.load %arg2[%23, %c7] : memref<2x12xf32, #tpu.memory_space<smem>>
    %25 = arith.index_cast %arg0 : i32 to index
    %c8 = arith.constant 8 : index
    %26 = memref.load %arg2[%25, %c8] : memref<2x12xf32, #tpu.memory_space<smem>>
    %27 = arith.index_cast %arg0 : i32 to index
    %c9 = arith.constant 9 : index
    %28 = memref.load %arg2[%27, %c9] : memref<2x12xf32, #tpu.memory_space<smem>>
    %29 = arith.index_cast %arg0 : i32 to index
    %c10 = arith.constant 10 : index
    %30 = memref.load %arg2[%29, %c10] : memref<2x12xf32, #tpu.memory_space<smem>>
    %31 = arith.index_cast %arg0 : i32 to index
    %c11 = arith.constant 11 : index
    %32 = memref.load %arg2[%31, %c11] : memref<2x12xf32, #tpu.memory_space<smem>>
    %33 = vector.broadcast %10 : f32 to vector<16x128xf32>
    %34 = arith.mulf %33, %8 : vector<16x128xf32>
    %35 = vector.broadcast %12 : f32 to vector<16x128xf32>
    %36 = arith.mulf %35, %7 : vector<16x128xf32>
    %37 = arith.addf %34, %36 : vector<16x128xf32>
    %38 = vector.broadcast %14 : f32 to vector<16x128xf32>
    %39 = arith.addf %37, %38 : vector<16x128xf32>
    %40 = arith.mulf %1, %39 : vector<16x128xf32>
    %41 = vector.broadcast %16 : f32 to vector<16x128xf32>
    %42 = arith.addf %40, %41 : vector<16x128xf32>
    %43 = vector.broadcast %18 : f32 to vector<16x128xf32>
    %44 = arith.mulf %43, %8 : vector<16x128xf32>
    %45 = vector.broadcast %20 : f32 to vector<16x128xf32>
    %46 = arith.mulf %45, %7 : vector<16x128xf32>
    %47 = arith.addf %44, %46 : vector<16x128xf32>
    %48 = vector.broadcast %22 : f32 to vector<16x128xf32>
    %49 = arith.addf %47, %48 : vector<16x128xf32>
    %50 = arith.mulf %1, %49 : vector<16x128xf32>
    %51 = vector.broadcast %24 : f32 to vector<16x128xf32>
    %52 = arith.addf %50, %51 : vector<16x128xf32>
    %53 = vector.broadcast %26 : f32 to vector<16x128xf32>
    %54 = arith.mulf %53, %8 : vector<16x128xf32>
    %55 = vector.broadcast %28 : f32 to vector<16x128xf32>
    %56 = arith.mulf %55, %7 : vector<16x128xf32>
    %57 = arith.addf %54, %56 : vector<16x128xf32>
    %58 = vector.broadcast %30 : f32 to vector<16x128xf32>
    %59 = arith.addf %57, %58 : vector<16x128xf32>
    %60 = arith.mulf %1, %59 : vector<16x128xf32>
    %61 = vector.broadcast %32 : f32 to vector<16x128xf32>
    %62 = arith.addf %60, %61 : vector<16x128xf32>
    %cst = arith.constant 1.000000e-07 : f32
    %63 = vector.broadcast %cst : f32 to vector<16x128xf32>
    %64 = arith.addf %62, %63 : vector<16x128xf32>
    %65 = tpu.reciprocal %64 {approx = true} : vector<16x128xf32> -> vector<16x128xf32>
    %66 = arith.mulf %64, %65 : vector<16x128xf32>
    %cst_3 = arith.constant 2.000000e+00 : f32
    %67 = vector.broadcast %cst_3 : f32 to vector<16x128xf32>
    %68 = arith.subf %67, %66 : vector<16x128xf32>
    %69 = arith.mulf %65, %68 : vector<16x128xf32>
    %70 = arith.mulf %42, %69 : vector<16x128xf32>
    %cst_4 = arith.constant 0.13333334 : f32
    %71 = vector.broadcast %cst_4 : f32 to vector<16x128xf32>
    %72 = arith.mulf %70, %71 : vector<16x128xf32>
    %cst_5 = arith.constant 1.000000e+00 : f32
    %73 = vector.broadcast %cst_5 : f32 to vector<16x128xf32>
    %74 = arith.subf %72, %73 : vector<16x128xf32>
    %c0_6 = arith.constant 0 : index
    %c0_7 = arith.constant 0 : index
    %c0_8 = arith.constant 0 : index
    %75 = vector.load %arg4[%c0_6, %c0_7, %c0_8] : memref<1x16x128xf32, #tpu.memory_space<vmem>>, vector<1x16x128xf32>
    %76 = vector.shape_cast %75 : vector<1x16x128xf32> to vector<16x128xf32>
    %77 = vector.shape_cast %74 : vector<16x128xf32> to vector<1x16x128xf32>
    tpu.vector_store %arg4[%c0_6, %c0_7, %c0_8], %77 {strides = array<i32>} : memref<1x16x128xf32, #tpu.memory_space<vmem>>, vector<1x16x128xf32>,
    %78 = arith.mulf %52, %69 : vector<16x128xf32>
    %cst_9 = arith.constant 0.13333334 : f32
    %79 = vector.broadcast %cst_9 : f32 to vector<16x128xf32>
    %80 = arith.mulf %78, %79 : vector<16x128xf32>
    %cst_10 = arith.constant 1.000000e+00 : f32
    %81 = vector.broadcast %cst_10 : f32 to vector<16x128xf32>
    %82 = arith.subf %80, %81 : vector<16x128xf32>
    %c0_11 = arith.constant 0 : index
    %c0_12 = arith.constant 0 : index
    %c0_13 = arith.constant 0 : index
    %83 = vector.load %arg5[%c0_11, %c0_12, %c0_13] : memref<1x16x128xf32, #tpu.memory_space<vmem>>, vector<1x16x128xf32>
    %84 = vector.shape_cast %83 : vector<1x16x128xf32> to vector<16x128xf32>
    %85 = vector.shape_cast %82 : vector<16x128xf32> to vector<1x16x128xf32>
    tpu.vector_store %arg5[%c0_11, %c0_12, %c0_13], %85 {strides = array<i32>} : memref<1x16x128xf32, #tpu.memory_space<vmem>>, vector<1x16x128xf32>,
    return
  }
  func.func @transform_0(%arg0: i32, %arg1: i32, %arg2: memref<2x12xf32, #tpu.memory_space<smem>>) -> (i32, i32, i32) {
    %c0_i32 = arith.constant 0 : i32
    %c0_i32_0 = arith.constant 0 : i32
    return %arg0, %arg1, %c0_i32 : i32, i32, i32
  }
  func.func @transform_1(%arg0: i32, %arg1: i32, %arg2: memref<2x12xf32, #tpu.memory_space<smem>>) -> (i32, i32, i32) {
    %c0_i32 = arith.constant 0 : i32
    %c0_i32_0 = arith.constant 0 : i32
    return %arg0, %arg1, %c0_i32 : i32, i32, i32
  }
  func.func @transform_2(%arg0: i32, %arg1: i32, %arg2: memref<2x12xf32, #tpu.memory_space<smem>>) -> (i32, i32, i32) {
    %c0_i32 = arith.constant 0 : i32
    %c0_i32_0 = arith.constant 0 : i32
    return %arg0, %arg1, %c0_i32 : i32, i32, i32
  }
}

</mosaic_0001>

<llo_original>
// kernel: tpu_custom_call.1
$region0: #{tpu_custom_call.1}
  #allocation0 [shape = 'u32[]', space=smem, size = 0x4, offset = 0x4, fixed_abs, tag = 'smem constant byte address 0x4 - core index']
  #allocation1 [shape = 'u32[144,128]{1,0:T(1,128)}', space=vmem, size = 0x12000, scoped, tag = 'internal scratch']
  #allocation2 [shape = 's32[1]{0}', space=sflag, size = 0x4, scoped, tag = 'scoped memory for tpu_custom_call.1']
  #allocation3 [shape = 'u8[1024]{0}', space=smem, size = 0x400, scoped, tag = 'prefetched SMEM operand 0']
  %s0 = inlined_call_operand.hbm [shape: f32[2,12], index: 0, kind: input, shape index: {}]
  %s1 = inlined_call_operand.hbm [shape: f32[2,16,128], index: 1, kind: input, shape index: {}]
  %s2 = inlined_call_operand.hbm [shape: f32[2,16,128], index: 2, kind: output, shape index: {0}]
  %s3 = inlined_call_operand.hbm [shape: f32[2,16,128], index: 3, kind: output, shape index: {1}]
  %4 = xla_tuple %s2, %s3
  %s5 = sld [smem:[#allocation0]]
  $region49: #{tpu_custom_call.1} parent=0
    _
  %s7 = ssub.s32 1, %s5
  %s8 = scalar_select 0, %s7, %s5
  %10 = dma.hbm_to_smem %s0, 32, [#allocation3], [#allocation2]
  %11 = dma.done [#allocation2], 32
  %12 = sfence
  $region1: #{tpu_custom_call.1} parent=0
    #allocation4 [shape = 'u8[16384]{0}', space=vmem, size = 0x4000, scoped, tag = 'input window, operand 1']
    #allocation5 [shape = 's32[2]{0}', space=sflag, size = 0x8, scoped, tag = 'scoped memory for tpu_custom_call.1']
    #allocation6 [shape = 's32[2]{0}', space=sflag, size = 0x8, scoped, tag = 'scoped memory for tpu_custom_call.1']
    #allocation7 [shape = 'u8[16384]{0}', space=vmem, size = 0x4000, scoped, tag = 'output window, operand 0']
    #allocation8 [shape = 'u8[16384]{0}', space=vmem, size = 0x4000, scoped, tag = 'output window, operand 1']
    #allocation9 [shape = 's32[2]{0}', space=sflag, size = 0x8, scoped, tag = 'scoped memory for tpu_custom_call.1']
    %13 = vsyncpa [#allocation5], 0
    %s14 = scalar_lea.sflag [#allocation5], 1
    %15 = vsyncpa %s14, 0
    %16 = vsyncpa [#allocation6], 0
    %s17 = scalar_lea.sflag [#allocation6], 1
    %18 = vsyncpa %s17, 0
    %19 = vsyncpa [#allocation9], 0
    %s20 = scalar_lea.sflag [#allocation9], 1
    %21 = vsyncpa %s20, 0
    loop: start=0, step=1, limit=4
    $region2: #{tpu_custom_call.1} parent=1 // loop_pre_header
      _
    $region3: #{tpu_custom_call.1} parent=1 // loop_header
      %s23 = sphi 0, %s27
      %p24 = scmp.ge.s32.totalorder %s23, 4
      %s30 = sphi 0, %s42
      %s31 = sphi 0, %s38
      %s32 = sphi 0, %s30
      %s33 = sphi 0, %s31
      %s34 = sphi 0, %s32
      %s35 = sphi 0, %s33
      %s47 = sphi 0, %s49
      %s50 = sphi 0, %s47
      %s51 = sphi 0, %s50
      %s67 = sphi 0, %s51
      %s75 = sphi 0, %s77
      %s78 = sphi 0, %s75
      %s79 = sphi 0, %s78
      %s95 = sphi 0, %s79
      %s103 = sphi 0, %s105
      %s106 = sphi 0, %s103
      %s107 = sphi 0, %s106
      %s123 = sphi 0, %s107
    $region4: #{tpu_custom_call.1} parent=1 // loop_header_branch
      %26 = sbr.rel (%p24) target = $region8
    $region5: #{tpu_custom_call.1} parent=1 // loop_body
      %s28 = ssub.s32 %s23, 1
      %s29 = ssub.s32 %s23, 2
      %s36 = sadd.s32 1, %s31
      %p37 = scmp.ge.s32.totalorder %s36, 1
      %s38 = scalar_select %p37, 0, %s36
      %s39 = sadd.s32 1, %s30
      %s40 = scalar_select %p37, %s39, %s30
      %p41 = scmp.ge.s32.totalorder %s40, 2
      %s42 = scalar_select %p41, 0, %s40
      %s43 = ssub.s32 %s30, %s42
      %s44 = ssub.s32 %s31, %s38
      %s45 = sor.u32 %s43, %s44
      %p46 = scmp.eq.s32.totalorder %s45, 0
      %s48 = sadd.s32 %s47, 1
      %s49 = scalar_select %p46, %s47, %s48
      %p52 = pneg %p46
      %p53 = scmp.eq.s32.totalorder %s23, 1
      %p54 = por %p52, %p53
      %p55 = scmp.ne.s32.totalorder %s47, %s50
      %p56 = scmp.eq.s32.totalorder %s23, 0
      %p57 = por %p55, %p56
      %p58 = scmp.ne.s32.totalorder %s47, %s50
      %p59 = scmp.eq.s32.totalorder %s28, 1
      %p60 = por %p58, %p59
      %p61 = scmp.ne.s32.totalorder %s50, %s51
      %p62 = scmp.eq.s32.totalorder %s28, 0
      %p63 = por %p61, %p62
      %p64 = scmp.ne.s32.totalorder %s50, %s51
      %p65 = scmp.eq.s32.totalorder %s29, 1
      %p66 = por %p64, %p65
      %p68 = scmp.ne.s32.totalorder %s51, %s67
      %p69 = scmp.eq.s32.totalorder %s29, 0
      %p70 = por %p68, %p69
      %s71 = ssub.s32 %s30, %s42
      %s72 = ssub.s32 %s31, %s38
      %s73 = sor.u32 %s71, %s72
      %p74 = scmp.eq.s32.totalorder %s73, 0
      %s76 = sadd.s32 %s75, 1
      %s77 = scalar_select %p74, %s75, %s76
      %p80 = pneg %p74
      %p81 = scmp.eq.s32.totalorder %s23, 1
      %p82 = por %p80, %p81
      %p83 = scmp.ne.s32.totalorder %s75, %s78
      %p84 = scmp.eq.s32.totalorder %s23, 0
      %p85 = por %p83, %p84
      %p86 = scmp.ne.s32.totalorder %s75, %s78
      %p87 = scmp.eq.s32.totalorder %s28, 1
      %p88 = por %p86, %p87
      %p89 = scmp.ne.s32.totalorder %s78, %s79
      %p90 = scmp.eq.s32.totalorder %s28, 0
      %p91 = por %p89, %p90
      %p92 = scmp.ne.s32.totalorder %s78, %s79
      %p93 = scmp.eq.s32.totalorder %s29, 1
      %p94 = por %p92, %p93
      %p96 = scmp.ne.s32.totalorder %s79, %s95
      %p97 = scmp.eq.s32.totalorder %s29, 0
      %p98 = por %p96, %p97
      %s99 = ssub.s32 %s30, %s42
      %s100 = ssub.s32 %s31, %s38
      %s101 = sor.u32 %s99, %s100
      %p102 = scmp.eq.s32.totalorder %s101, 0
      %s104 = sadd.s32 %s103, 1
      %s105 = scalar_select %p102, %s103, %s104
      %p108 = pneg %p102
      %p109 = scmp.eq.s32.totalorder %s23, 1
      %p110 = por %p108, %p109
      %p111 = scmp.ne.s32.totalorder %s103, %s106
      %p112 = scmp.eq.s32.totalorder %s23, 0
      %p113 = por %p111, %p112
      %p114 = scmp.ne.s32.totalorder %s103, %s106
      %p115 = scmp.eq.s32.totalorder %s28, 1
      %p116 = por %p114, %p115
      %p117 = scmp.ne.s32.totalorder %s106, %s107
      %p118 = scmp.eq.s32.totalorder %s28, 0
      %p119 = por %p117, %p118
      %p120 = scmp.ne.s32.totalorder %s106, %s107
      %p121 = scmp.eq.s32.totalorder %s29, 1
      %p122 = por %p120, %p121
      %p124 = scmp.ne.s32.totalorder %s107, %s123
      %p125 = scmp.eq.s32.totalorder %s29, 0
      %p126 = por %p124, %p125
      %p127 = scmp.le.s32.totalorder 1, %s23
      %p128 = scmp.lt.s32.totalorder %s23, 3
      %p129 = pnand %p127, %p128
      %p130 = pneg %p129
      // Predicated region
      $region9: #{tpu_custom_call.1} parent=5 // pred_check
        _
      $region10: #{tpu_custom_call.1} parent=5 // pred_check_branch
        %132 = sbr.rel (%p129) target = $region12
      $region11: #{tpu_custom_call.1} parent=5 // pred_region
        %s133 = ssub.s32 %s23, 1
      $region12: #{tpu_custom_call.1} parent=5 // pred_fallthru
        _
      %p134 = scmp.lt.s32.totalorder %s23, 2
      // Predicated region
      $region13: #{tpu_custom_call.1} parent=5 // pred_check
        %p135 = pneg %p134
      $region14: #{tpu_custom_call.1} parent=5 // pred_check_branch
        %137 = sbr.rel (%p135) target = $region16
      $region15: #{tpu_custom_call.1} parent=5 // pred_region
        // Predicated region
        $region17: #{tpu_custom_call.1} parent=15 // pred_check
          %p138 = pneg %p57
        $region18: #{tpu_custom_call.1} parent=15 // pred_check_branch
          %140 = sbr.rel (%p138) target = $region20
        $region19: #{tpu_custom_call.1} parent=15 // pred_region
          %s141 = sand.u32 %s47, 1
          %s142 = scalar_lea.sflag [#allocation5], %s141
          %s143 = sand.u32 %s47, 1
          %s144 = smul.addr %s143, 16
          %s145 = scalar_lea.vmem [#allocation4], %s144
          %s146 = smul.u32 2, %s31
          %s148 = ssub.s32 256, 256
          %149 = vsyncadd %s142, %s148
          %s150 = smul.addr %s30, 2
          %s151 = sadd.s32 %s146, %s150
          %s152 = smul.addr %s151, 128
          %s153 = scalar_lea.hbm %s1, %s152
          %s154 = sshll.u32 %s145, 4
          %s155 = int_to_ptr.vmem [resolvable:$true] %s154
          %160 = dma.hbm_to_vmem [thread:$0]  %s153, 256, %s155, %s142, 128, 128, 8
        $region20: #{tpu_custom_call.1} parent=15 // pred_fallthru
          _
      $region16: #{tpu_custom_call.1} parent=5 // pred_fallthru
        _
      %p161 = scmp.le.s32.totalorder 1, %s23
      %p162 = scmp.lt.s32.totalorder %s23, 3
      %p163 = pnand %p161, %p162
      %p164 = pneg %p163
      // Predicated region
      $region21: #{tpu_custom_call.1} parent=5 // pred_check
        _
      $region22: #{tpu_custom_call.1} parent=5 // pred_check_branch
        %166 = sbr.rel (%p163) target = $region24
      $region23: #{tpu_custom_call.1} parent=5 // pred_region
        %s167 = ssub.s32 %s23, 1
        %s168 = sand.u32 %s50, 1
        %s169 = scalar_lea.sflag [#allocation5], %s168
        %s170 = sand.u32 %s50, 1
        %s171 = smul.addr %s170, 16
        %s172 = scalar_lea.vmem [#allocation4], %s171
        // Predicated region
        $region25: #{tpu_custom_call.1} parent=23 // pred_check
          %p173 = pneg %p63
        $region26: #{tpu_custom_call.1} parent=23 // pred_check_branch
          %175 = sbr.rel (%p173) target = $region28
        $region27: #{tpu_custom_call.1} parent=23 // pred_region
          %176 = dma.done %s169, 256
        $region28: #{tpu_custom_call.1} parent=23 // pred_fallthru
          _
        %s177 = sand.u32 %s50, 1
        %s178 = scalar_lea.sflag [#allocation5], %s177
        %s179 = sand.u32 %s50, 1
        %s180 = smul.addr %s179, 16
        %s181 = scalar_lea.vmem [#allocation4], %s180
        %p182 = pneg %p63
        %p183 = pneg %p60
        %p184 = pneg %p91
        %p185 = pneg %p88
        %s186 = sand.u32 %s78, 1
        %s187 = scalar_lea.sflag [#allocation6], %s186
        %s188 = sand.u32 %s78, 1
        %s189 = smul.addr %s188, 16
        %s190 = scalar_lea.vmem [#allocation7], %s189
        %p191 = pneg %p119
        %p192 = pneg %p116
        %s193 = sand.u32 %s106, 1
        %s194 = scalar_lea.sflag [#allocation9], %s193
        %s195 = sand.u32 %s106, 1
        %s196 = smul.addr %s195, 16
        %s197 = scalar_lea.vmem [#allocation8], %s196
        %s198 = smul.u32 2, %s33
        %s199 = smul.u32 2, %s33
        %s200 = smul.u32 2, %s33
        %v201 = vld [vmem:[%s172] sm:$0xff]
        %v202 = vld [vmem:[%s172 + $0x8] sm:$0xff]
        %v203 = vlaneseq
        %v204 = vshrl.u32 %v203, 7
        %v205 = vadd.s32 %v204, 8
        %v206 = vlaneseq
        %v207 = vand.u32 %v206, 127
        %s208 = smul.u32 %s33, 16
        %v209 = vstv %s208
        %v210 = vadd.s32 %v209, %v204
        %v211 = vadd.s32 %v209, %v205
        %v212 = vcvt.s32.f32 %v210
        %v213 = vcvt.s32.f32 %v211
        %v214 = vcvt.s32.f32 %v207
        %s215 = smul.u32 %s32, 128
        %s216 = sld [smem:[#allocation3 + %s215]]
        %s217 = sadd.s32 %s215, 1
        %s218 = sld [smem:[#allocation3 + %s217]]
        %s219 = sadd.s32 %s215, 2
        %s220 = sld [smem:[#allocation3 + %s219]]
        %s221 = sadd.s32 %s215, 3
        %s222 = sld [smem:[#allocation3 + %s221]]
        %s223 = sadd.s32 %s215, 4
        %s224 = sld [smem:[#allocation3 + %s223]]
        %s225 = sadd.s32 %s215, 5
        %s226 = sld [smem:[#allocation3 + %s225]]
        %s227 = sadd.s32 %s215, 6
        %s228 = sld [smem:[#allocation3 + %s227]]
        %s229 = sadd.s32 %s215, 7
        %s230 = sld [smem:[#allocation3 + %s229]]
        %s231 = sadd.s32 %s215, 8
        %s232 = sld [smem:[#allocation3 + %s231]]
        %s233 = sadd.s32 %s215, 9
        %s234 = sld [smem:[#allocation3 + %s233]]
        %s235 = sadd.s32 %s215, 10
        %s236 = sld [smem:[#allocation3 + %s235]]
        %s237 = sadd.s32 %s215, 11
        %s238 = sld [smem:[#allocation3 + %s237]]
        %v239 = vstv %s216
        %v240 = vmul.f32 %v239, %v214
        %v241 = vstv %s218
        %v242 = vmul.f32 %v241, %v212
        %v243 = vmul.f32 %v241, %v213
        %v244 = vadd.f32 %v240, %v242
        %v245 = vadd.f32 %v240, %v243
        %v246 = vstv %s220
        %v247 = vadd.f32 %v244, %v246
        %v248 = vadd.f32 %v245, %v246
        %v249 = vmul.f32 %v201, %v247
        %v250 = vmul.f32 %v202, %v248
        %v251 = vstv %s222
        %v252 = vadd.f32 %v249, %v251
        %v253 = vadd.f32 %v250, %v251
        %v254 = vstv %s224
        %v255 = vmul.f32 %v254, %v214
        %v256 = vstv %s226
        %v257 = vmul.f32 %v256, %v212
        %v258 = vmul.f32 %v256, %v213
        %v259 = vadd.f32 %v255, %v257
        %v260 = vadd.f32 %v255, %v258
        %v261 = vstv %s228
        %v262 = vadd.f32 %v259, %v261
        %v263 = vadd.f32 %v260, %v261
        %v264 = vmul.f32 %v201, %v262
        %v265 = vmul.f32 %v202, %v263
        %v266 = vstv %s230
        %v267 = vadd.f32 %v264, %v266
        %v268 = vadd.f32 %v265, %v266
        %v269 = vstv %s232
        %v270 = vmul.f32 %v269, %v214
        %v271 = vstv %s234
        %v272 = vmul.f32 %v271, %v212
        %v273 = vmul.f32 %v271, %v213
        %v274 = vadd.f32 %v270, %v272
        %v275 = vadd.f32 %v270, %v273
        %v276 = vstv %s236
        %v277 = vadd.f32 %v274, %v276
        %v278 = vadd.f32 %v275, %v276
        %v279 = vmul.f32 %v201, %v277
        %v280 = vmul.f32 %v202, %v278
        %v281 = vstv %s238
        %v282 = vadd.f32 %v279, %v281
        %v283 = vadd.f32 %v280, %v281
        %v284 = vadd.f32 %v282, 1e-07
        %v285 = vadd.f32 %v283, 1e-07
        %v286 = vrcp.pop %v284
        %v287 = vrcp.pop %v285
        %v288 = vmul.f32 %v284, %v286
        %v289 = vmul.f32 %v285, %v287
        %v290 = vsub.f32 2.0, %v288
        %v291 = vsub.f32 2.0, %v289
        %v292 = vmul.f32 %v286, %v290
        %v293 = vmul.f32 %v287, %v291
        %v294 = vmul.f32 %v252, %v292
        %v295 = vmul.f32 %v253, %v293
        %v296 = vmul.f32 %v294, 0.13333334
        %v297 = vmul.f32 %v295, 0.13333334
        %v298 = vsub.f32 %v296, 1.0
        %v299 = vsub.f32 %v297, 1.0
        %300 = vst [vmem:[%s190] sm:$0xff] %v298
        %301 = vst [vmem:[%s190 + $0x8] sm:$0xff] %v299
        %v302 = vmul.f32 %v267, %v292
        %v303 = vmul.f32 %v268, %v293
        %v304 = vmul.f32 %v302, 0.13333334
        %v305 = vmul.f32 %v303, 0.13333334
        %v306 = vsub.f32 %v304, 1.0
        %v307 = vsub.f32 %v305, 1.0
        %308 = vst [vmem:[%s197] sm:$0xff] %v306
        %309 = vst [vmem:[%s197 + $0x8] sm:$0xff] %v307
        %s310 = sand.u32 %s78, 1
        %s311 = scalar_lea.sflag [#allocation6], %s310
        %s312 = sand.u32 %s78, 1
        %s313 = smul.addr %s312, 16
        %s314 = scalar_lea.vmem [#allocation7], %s313
        %s315 = sand.u32 %s106, 1
        %s316 = scalar_lea.sflag [#allocation9], %s315
        %s317 = sand.u32 %s106, 1
        %s318 = smul.addr %s317, 16
        %s319 = scalar_lea.vmem [#allocation8], %s318
        // Predicated region
        $region29: #{tpu_custom_call.1} parent=23 // pred_check
          %p320 = pneg %p88
        $region30: #{tpu_custom_call.1} parent=23 // pred_check_branch
          %322 = sbr.rel (%p320) target = $region32
        $region31: #{tpu_custom_call.1} parent=23 // pred_region
          %s323 = smul.u32 2, %s33
          %s325 = ssub.s32 256, 256
          %326 = vsyncadd %s311, %s325
          %s327 = smul.addr %s32, 2
          %s328 = sadd.s32 %s323, %s327
          %s329 = smul.addr %s328, 128
          %s330 = scalar_lea.hbm %s2, %s329
          %s331 = sshll.u32 %s314, 4
          %s332 = int_to_ptr.vmem [resolvable:$true] %s331
          %337 = dma.vmem_to_hbm [thread:$0]  %s332, 256, %s330, %s311, 128, 128, 8
        $region32: #{tpu_custom_call.1} parent=23 // pred_fallthru
          _
        // Predicated region
        $region33: #{tpu_custom_call.1} parent=23 // pred_check
          %p338 = pneg %p116
        $region34: #{tpu_custom_call.1} parent=23 // pred_check_branch
          %340 = sbr.rel (%p338) target = $region36
        $region35: #{tpu_custom_call.1} parent=23 // pred_region
          %s341 = smul.u32 2, %s33
          %s343 = ssub.s32 256, 256
          %344 = vsyncadd %s316, %s343
          %s345 = smul.addr %s32, 2
          %s346 = sadd.s32 %s341, %s345
          %s347 = smul.addr %s346, 128
          %s348 = scalar_lea.hbm %s3, %s347
          %s349 = sshll.u32 %s319, 4
          %s350 = int_to_ptr.vmem [resolvable:$true] %s349
          %355 = dma.vmem_to_hbm [thread:$0]  %s350, 256, %s348, %s316, 128, 128, 8
        $region36: #{tpu_custom_call.1} parent=23 // pred_fallthru
          _
      $region24: #{tpu_custom_call.1} parent=5 // pred_fallthru
        _
      %p356 = scmp.le.s32.totalorder 2, %s23
      // Predicated region
      $region37: #{tpu_custom_call.1} parent=5 // pred_check
        %p357 = pneg %p356
      $region38: #{tpu_custom_call.1} parent=5 // pred_check_branch
        %359 = sbr.rel (%p357) target = $region40
      $region39: #{tpu_custom_call.1} parent=5 // pred_region
        %s360 = ssub.s32 %s23, 2
        // Predicated region
        $region41: #{tpu_custom_call.1} parent=39 // pred_check
          %p361 = pneg %p94
        $region42: #{tpu_custom_call.1} parent=39 // pred_check_branch
          %363 = sbr.rel (%p361) target = $region44
        $region43: #{tpu_custom_call.1} parent=39 // pred_region
          %s364 = sand.u32 %s79, 1
          %s365 = scalar_lea.sflag [#allocation6], %s364
          %s366 = sand.u32 %s79, 1
          %s367 = smul.addr %s366, 16
          %s368 = scalar_lea.vmem [#allocation7], %s367
          %369 = dma.done %s365, 256
        $region44: #{tpu_custom_call.1} parent=39 // pred_fallthru
          _
        // Predicated region
        $region45: #{tpu_custom_call.1} parent=39 // pred_check
          %p370 = pneg %p122
        $region46: #{tpu_custom_call.1} parent=39 // pred_check_branch
          %372 = sbr.rel (%p370) target = $region48
        $region47: #{tpu_custom_call.1} parent=39 // pred_region
          %s373 = sand.u32 %s107, 1
          %s374 = scalar_lea.sflag [#allocation9], %s373
          %s375 = sand.u32 %s107, 1
          %s376 = smul.addr %s375, 16
          %s377 = scalar_lea.vmem [#allocation8], %s376
          %378 = dma.done %s374, 256
        $region48: #{tpu_custom_call.1} parent=39 // pred_fallthru
          _
      $region40: #{tpu_custom_call.1} parent=5 // pred_fallthru
        _
    $region6: #{tpu_custom_call.1} parent=1 // loop_footer
      %s27 = sadd.s32 1, %s23
    $region7: #{tpu_custom_call.1} parent=1 // loop_footer_branch
      %22 = sbr.rel target = $region3
    $region8: #{tpu_custom_call.1} parent=1 // loop_exit
      _
    %379 = vsyncpa [#allocation5], 1
    %s380 = scalar_lea.sflag [#allocation5], 1
    %381 = vsyncpa %s380, 1
    %382 = vsyncpa [#allocation6], 1
    %s383 = scalar_lea.sflag [#allocation6], 1
    %384 = vsyncpa %s383, 1
    %385 = vsyncpa [#allocation9], 1
    %s386 = scalar_lea.sflag [#allocation9], 1
    %387 = vsyncpa %s386, 1

</llo_original>
